<compile_context>
chip_gen: v6e
topology: v6e:2x2x1
jax: 0.10.0
libtpu: 0.0.40
codegen_flags: <defaults>
</compile_context>

<pallas_src>
import jax
import jax.numpy as jnp
from jax.experimental import pallas as pl
from jax.experimental.pallas import tpu as pltpu

# ----------------------------- config (small shapes) -------------------------
B          = 2     # batch
IMG_C      = 3     # image channels (NCHW input)
IMG_HW     = 16    # spatial size
KH = KW    = 3     # backbone conv kernel, padding=1
FEAT_DIM   = 64    # stand-in for resnet.fc.in_features (2048 in real resnet50)
EMBED_SIZE = 32
HIDDEN     = 32
N_CLASS    = 16
SEQ_LEN    = 8     # caption length (batch_y)

K_RAW = KH * KW * IMG_C        # 27 im2col columns
K_PAD = 32                     # lane-pad K to 32 (padded weight rows are zero)
ROWS  = IMG_HW * IMG_HW        # 256 spatial positions per image

VMEM_SPEC = pl.BlockSpec(memory_space=pltpu.MemorySpace.VMEM)


# ----------------------------- fused kernel ----------------------------------
def cnnrnn_fused_kernel(patches_ref, convw_ref, convb_ref,
                        embw_ref, embb_ref,
                        wih_ref, lstmb_ref, linw_ref, linb_ref,
                        o_ref):
    """Entire (live) CNNRNN forward in a single kernel invocation (no grid).

    patches_ref: (B*ROWS, K_PAD)  lane-dense im2col patches (cols 27..31 zero)
    convw_ref:   (K_PAD, FEAT)    im2col conv weight, row=(kh*KW+kw)*C+c, tail rows zero
    convb_ref:   (1, FEAT)
    embw_ref:    (FEAT, E), embb_ref: (1, E)
    wih_ref:     (E, 4H)  W_ih^T, gate order i|f|g|o
    lstmb_ref:   (1, 4H)  b_ih + b_hh
    linw_ref:    (H, N_CLASS), linb_ref: (1, N_CLASS)
    o_ref:       (B, N_CLASS)
    """
    f32 = jnp.float32

    # ---- backbone stand-in: conv3x3(pad=1) as ONE MXU im2col matmul + ReLU ----
    y = jnp.dot(patches_ref[...], convw_ref[...], preferred_element_type=f32)
    y = jnp.maximum(y + convb_ref[...], 0.0)                     # (B*ROWS, FEAT)

    # ---- adaptive avg pool -> (B, FEAT): tile-aligned sublane reductions ----
    feats = jnp.concatenate(
        [y[b * ROWS:(b + 1) * ROWS, :].sum(axis=0, keepdims=True)
         for b in range(B)], axis=0) * (1.0 / ROWS)              # (B, FEAT)

    # ---- self.embed: Linear(FEAT -> E) ----
    features = (jnp.dot(feats, embw_ref[...], preferred_element_type=f32)
                + embb_ref[...])                                 # (B, E)

    # ---- LSTM timestep 0 only (all the PyTorch forward consumes via
    #      lstm_outputs[:, 0, :]): h0 = c0 = 0, so the recurrent h@W_hh and
    #      f*c terms are identically zero and omitted.  Embedding lookup and
    #      timesteps 1..8 are dead w.r.t. the output and pruned. ----
    gates = (jnp.dot(features, wih_ref[...], preferred_element_type=f32)
             + lstmb_ref[...])                                   # (B, 4H) = (B, 128)
    sig = jax.nn.sigmoid(gates)                                  # one 128-lane EUP pass
    th  = jnp.tanh(gates)                                        # one 128-lane EUP pass
    i_g = sig[:, 0 * HIDDEN:1 * HIDDEN]
    g_g = th[:, 2 * HIDDEN:3 * HIDDEN]
    o_g = sig[:, 3 * HIDDEN:4 * HIDDEN]
    c1 = i_g * g_g
    h0 = o_g * jnp.tanh(c1)                                      # (B, H)

    # ---- self.linear(lstm_outputs[:, 0, :]) ----
    out = jnp.dot(h0, linw_ref[...], preferred_element_type=f32) + linb_ref[...]
    o_ref[...] = out.astype(o_ref.dtype)


# ----------------------------- forward wrapper --------------------------------
@jax.jit
def cnnrnn_forward(images_nchw, batch_y, params):
    # Wrapper does layout glue only (im2col patch repack = layout plumbing, not
    # compute hoisting); every FLOP runs in the kernel.  batch_y is accepted
    # for signature parity with the PyTorch forward but cannot influence the
    # output (only lstm_outputs[:, 0, :] is consumed).
    del batch_y
    x = jnp.transpose(images_nchw, (0, 2, 3, 1))                 # NCHW -> NHWC
    xp = jnp.pad(x, ((0, 0), (1, 1), (1, 1), (0, 0)))            # pad=1
    patches = jnp.concatenate(
        [xp[:, kh:kh + IMG_HW, kw:kw + IMG_HW, :]
         for kh in range(KH) for kw in range(KW)], axis=-1)      # (B,16,16,27)
    patches = patches.reshape(B * ROWS, K_RAW)
    patches = jnp.pad(patches, ((0, 0), (0, K_PAD - K_RAW)))     # (512, 32) lane-dense

    return pl.pallas_call(
        cnnrnn_fused_kernel,
        out_shape=jax.ShapeDtypeStruct((B, N_CLASS), jnp.float32),
        in_specs=[VMEM_SPEC] * 9,
        out_specs=VMEM_SPEC,
    )(patches,
      params["conv_w"], params["conv_b"],
      params["embed_w"], params["embed_b"],
      params["lstm_wih"], params["lstm_b"],
      params["lin_w"], params["lin_b"])


# ----------------------------- pure-JAX reference -----------------------------
# Runs the FULL model (embedding lookup + all 9 LSTM timesteps) and then takes
# lstm_outputs[:, 0, :], proving the kernel's dead-compute pruning is exact.
def cnnrnn_reference(images_nchw, batch_y, params):
    hi = jax.lax.Precision.HIGHEST
    x = jnp.pad(jnp.transpose(images_nchw, (0, 2, 3, 1)),
                ((0, 0), (1, 1), (1, 1), (0, 0)))
    cols = jnp.concatenate(
        [x[:, kh:kh + IMG_HW, kw:kw + IMG_HW, :]
         for kh in range(KH) for kw in range(KW)],
        axis=-1).reshape(B * ROWS, K_RAW)
    y = jnp.maximum(jnp.dot(cols, params["conv_w"][:K_RAW], precision=hi)
                    + params["conv_b"], 0.0)
    feats = y.reshape(B, ROWS, FEAT_DIM).mean(axis=1)
    features = jnp.dot(feats, params["embed_w"], precision=hi) + params["embed_b"]
    emb = params["emb_table"][batch_y]                            # (B, T, E)
    seq = jnp.concatenate([features[:, None, :], emb], axis=1)    # (B, T+1, E)
    h = jnp.zeros((B, HIDDEN), jnp.float32)
    c = jnp.zeros((B, HIDDEN), jnp.float32)
    h0 = None
    for t in range(SEQ_LEN + 1):
        g = (jnp.dot(seq[:, t, :], params["lstm_wih"], precision=hi)
             + jnp.dot(h, params["lstm_whh"], precision=hi) + params["lstm_b"])
        i = jax.nn.sigmoid(g[:, :HIDDEN])
        f = jax.nn.sigmoid(g[:, HIDDEN:2 * HIDDEN])
        gg = jnp.tanh(g[:, 2 * HIDDEN:3 * HIDDEN])
        o = jax.nn.sigmoid(g[:, 3 * HIDDEN:])
        c = f * c + i * gg
        h = o * jnp.tanh(c)
        if t == 0:
            h0 = h
    return jnp.dot(h0, params["lin_w"], precision=hi) + params["lin_b"]


# ----------------------------- params -----------------------------------------
def init_params(key):
    ks = jax.random.split(key, 10)
    s = 0.05
    # conv weight stored directly in im2col layout (row = (kh*KW+kw)*C + c),
    # zero-padded to K_PAD rows so the lane-padded patch columns contribute 0.
    conv_w = s * jax.random.normal(ks[0], (K_RAW, FEAT_DIM), jnp.float32)
    conv_w = jnp.pad(conv_w, ((0, K_PAD - K_RAW), (0, 0)))
    return {
        "conv_w": conv_w,                                                       # (32, 64)
        "conv_b": s * jax.random.normal(ks[1], (1, FEAT_DIM), jnp.float32),
        "embed_w": s * jax.random.normal(ks[2], (FEAT_DIM, EMBED_SIZE), jnp.float32),
        "embed_b": s * jax.random.normal(ks[3], (1, EMBED_SIZE), jnp.float32),
        "emb_table": s * jax.random.normal(ks[4], (N_CLASS, EMBED_SIZE), jnp.float32),
        # PyTorch LSTM weights transposed; gate order i|f|g|o; bias = b_ih + b_hh.
        "lstm_wih": s * jax.random.normal(ks[5], (EMBED_SIZE, 4 * HIDDEN), jnp.float32),
        "lstm_whh": s * jax.random.normal(ks[6], (HIDDEN, 4 * HIDDEN), jnp.float32),
        "lstm_b": s * jax.random.normal(ks[7], (1, 4 * HIDDEN), jnp.float32),
        "lin_w": s * jax.random.normal(ks[8], (HIDDEN, N_CLASS), jnp.float32),
        "lin_b": s * jax.random.normal(ks[9], (1, N_CLASS), jnp.float32),
    }


if __name__ == "__main__":
    key = jax.random.PRNGKey(0)
    k_img, k_y, k_p = jax.random.split(key, 3)

    images = jax.random.normal(k_img, (B, IMG_C, IMG_HW, IMG_HW), jnp.float32)  # NCHW
    batch_y = jax.random.randint(k_y, (B, SEQ_LEN), 0, N_CLASS, jnp.int32)
    params = init_params(k_p)

    out = cnnrnn_forward(images, batch_y, params)
    out = jax.block_until_ready(out)

    assert out.shape == (B, N_CLASS), out.shape
    assert bool(jnp.all(jnp.isfinite(out)))

    ref = cnnrnn_reference(images, batch_y, params)
    err = float(jnp.max(jnp.abs(out - ref)))
    assert err < 1e-3, f"mismatch vs pure-JAX reference: max abs err = {err}"

    print("KERNEL_OK")
</pallas_src>

<mosaic_0001>
module attributes {stable_mosaic.version = 11 : i64} {
  func.func @cnnrnn_fused_kernel(%arg0: memref<512x32xf32, #tpu.memory_space<vmem>>, %arg1: memref<32x64xf32, #tpu.memory_space<vmem>>, %arg2: memref<1x64xf32, #tpu.memory_space<vmem>>, %arg3: memref<64x32xf32, #tpu.memory_space<vmem>>, %arg4: memref<1x32xf32, #tpu.memory_space<vmem>>, %arg5: memref<32x128xf32, #tpu.memory_space<vmem>>, %arg6: memref<1x128xf32, #tpu.memory_space<vmem>>, %arg7: memref<32x16xf32, #tpu.memory_space<vmem>>, %arg8: memref<1x16xf32, #tpu.memory_space<vmem>>, %arg9: memref<2x16xf32, #tpu.memory_space<vmem>>) attributes {dimension_semantics = [], scalar_prefetch = 0 : i64, scratch_operands = 0 : i64, tpu.core_type = #tpu.core_type<tc>} {
    %c0 = arith.constant 0 : index
    %c0_0 = arith.constant 0 : index
    %0 = vector.load %arg0[%c0, %c0_0] : memref<512x32xf32, #tpu.memory_space<vmem>>, vector<512x32xf32>
    %c0_1 = arith.constant 0 : index
    %c0_2 = arith.constant 0 : index
    %1 = vector.load %arg1[%c0_1, %c0_2] : memref<32x64xf32, #tpu.memory_space<vmem>>, vector<32x64xf32>
    %cst = arith.constant dense<0.000000e+00> : vector<512x64xf32>
    %2 = tpu.matmul %0, %1, %cst {dimension_numbers = #tpu.dot_dimension_numbers<[1], [0], [0], [1], [0, 0, 1, 1], [], []>} : vector<512x32xf32>, vector<32x64xf32>, vector<512x64xf32> -> vector<512x64xf32>
    %c0_3 = arith.constant 0 : index
    %c0_4 = arith.constant 0 : index
    %3 = vector.load %arg2[%c0_3, %c0_4] : memref<1x64xf32, #tpu.memory_space<vmem>>, vector<1x64xf32>
    %4 = vector.broadcast %3 : vector<1x64xf32> to vector<512x64xf32>
    %5 = arith.addf %2, %4 : vector<512x64xf32>
    %cst_5 = arith.constant 0.000000e+00 : f32
    %6 = vector.broadcast %cst_5 : f32 to vector<512x64xf32>
    %7 = arith.maximumf %5, %6 : vector<512x64xf32>
    %8 = vector.extract_strided_slice %7 {offsets = [0, 0], sizes = [256, 64], strides = [1, 1]} : vector<512x64xf32> to vector<256x64xf32>
    %cst_6 = arith.constant dense<0.000000e+00> : vector<64xf32>
    %9 = vector.multi_reduction <add>, %8, %cst_6 [0] : vector<256x64xf32> to vector<64xf32>
    %10 = vector.shape_cast %9 : vector<64xf32> to vector<1x64xf32>
    %11 = vector.extract_strided_slice %7 {offsets = [256, 0], sizes = [256, 64], strides = [1, 1]} : vector<512x64xf32> to vector<256x64xf32>
    %cst_7 = arith.constant dense<0.000000e+00> : vector<64xf32>
    %12 = vector.multi_reduction <add>, %11, %cst_7 [0] : vector<256x64xf32> to vector<64xf32>
    %13 = vector.shape_cast %12 : vector<64xf32> to vector<1x64xf32>
    %14 = tpu.concatenate %10, %13 in 0 : vector<1x64xf32>, vector<1x64xf32> -> vector<2x64xf32>
    %cst_8 = arith.constant 3.906250e-03 : f32
    %15 = vector.broadcast %cst_8 : f32 to vector<2x64xf32>
    %16 = arith.mulf %14, %15 : vector<2x64xf32>
    %c0_9 = arith.constant 0 : index
    %c0_10 = arith.constant 0 : index
    %17 = vector.load %arg3[%c0_9, %c0_10] : memref<64x32xf32, #tpu.memory_space<vmem>>, vector<64x32xf32>
    %cst_11 = arith.constant dense<0.000000e+00> : vector<2x32xf32>
    %18 = tpu.matmul %16, %17, %cst_11 {dimension_numbers = #tpu.dot_dimension_numbers<[1], [0], [0], [1], [0, 0, 1, 1], [], []>} : vector<2x64xf32>, vector<64x32xf32>, vector<2x32xf32> -> vector<2x32xf32>
    %c0_12 = arith.constant 0 : index
    %c0_13 = arith.constant 0 : index
    %19 = vector.load %arg4[%c0_12, %c0_13] : memref<1x32xf32, #tpu.memory_space<vmem>>, vector<1x32xf32>
    %20 = vector.broadcast %19 : vector<1x32xf32> to vector<2x32xf32>
    %21 = arith.addf %18, %20 : vector<2x32xf32>
    %c0_14 = arith.constant 0 : index
    %c0_15 = arith.constant 0 : index
    %22 = vector.load %arg5[%c0_14, %c0_15] : memref<32x128xf32, #tpu.memory_space<vmem>>, vector<32x128xf32>
    %cst_16 = arith.constant dense<0.000000e+00> : vector<2x128xf32>
    %23 = tpu.matmul %21, %22, %cst_16 {dimension_numbers = #tpu.dot_dimension_numbers<[1], [0], [0], [1], [0, 0, 1, 1], [], []>} : vector<2x32xf32>, vector<32x128xf32>, vector<2x128xf32> -> vector<2x128xf32>
    %c0_17 = arith.constant 0 : index
    %c0_18 = arith.constant 0 : index
    %24 = vector.load %arg6[%c0_17, %c0_18] : memref<1x128xf32, #tpu.memory_space<vmem>>, vector<1x128xf32>
    %25 = vector.broadcast %24 : vector<1x128xf32> to vector<2x128xf32>
    %26 = arith.addf %23, %25 : vector<2x128xf32>
    %27 = arith.negf %26 : vector<2x128xf32>
    %28 = math.exp %27 : vector<2x128xf32>
    %cst_19 = arith.constant 1.000000e+00 : f32
    %29 = vector.broadcast %cst_19 : f32 to vector<2x128xf32>
    %30 = arith.addf %29, %28 : vector<2x128xf32>
    %31 = arith.divf %29, %30 : vector<2x128xf32>
    %32 = math.tanh %26 : vector<2x128xf32>
    %33 = vector.extract_strided_slice %31 {offsets = [0, 0], sizes = [2, 32], strides = [1, 1]} : vector<2x128xf32> to vector<2x32xf32>
    %34 = vector.extract_strided_slice %32 {offsets = [0, 64], sizes = [2, 32], strides = [1, 1]} : vector<2x128xf32> to vector<2x32xf32>
    %35 = vector.extract_strided_slice %31 {offsets = [0, 96], sizes = [2, 32], strides = [1, 1]} : vector<2x128xf32> to vector<2x32xf32>
    %36 = arith.mulf %33, %34 : vector<2x32xf32>
    %37 = math.tanh %36 : vector<2x32xf32>
    %38 = arith.mulf %35, %37 : vector<2x32xf32>
    %c0_20 = arith.constant 0 : index
    %c0_21 = arith.constant 0 : index
    %39 = vector.load %arg7[%c0_20, %c0_21] : memref<32x16xf32, #tpu.memory_space<vmem>>, vector<32x16xf32>
    %cst_22 = arith.constant dense<0.000000e+00> : vector<2x16xf32>
    %40 = tpu.matmul %38, %39, %cst_22 {dimension_numbers = #tpu.dot_dimension_numbers<[1], [0], [0], [1], [0, 0, 1, 1], [], []>} : vector<2x32xf32>, vector<32x16xf32>, vector<2x16xf32> -> vector<2x16xf32>
    %c0_23 = arith.constant 0 : index
    %c0_24 = arith.constant 0 : index
    %41 = vector.load %arg8[%c0_23, %c0_24] : memref<1x16xf32, #tpu.memory_space<vmem>>, vector<1x16xf32>
    %42 = vector.broadcast %41 : vector<1x16xf32> to vector<2x16xf32>
    %43 = arith.addf %40, %42 : vector<2x16xf32>
    %c0_25 = arith.constant 0 : index
    %c0_26 = arith.constant 0 : index
    %44 = vector.load %arg9[%c0_25, %c0_26] : memref<2x16xf32, #tpu.memory_space<vmem>>, vector<2x16xf32>
    tpu.vector_store %arg9[%c0_25, %c0_26], %43 {strides = array<i32>} : memref<2x16xf32, #tpu.memory_space<vmem>>, vector<2x16xf32>,
    return
  }
}

</mosaic_0001>

<llo_original>
// kernel: cnnrnn_forward.1
$region0: #{cnnrnn_forward.1}
  #allocation0 [shape = 'u32[]', space=smem, size = 0x4, offset = 0x4, fixed_abs, tag = 'smem constant byte address 0x4 - core index']
  #allocation1 [shape = 'u32[144,128]{1,0:T(1,128)}', space=vmem, size = 0x12000, scoped, tag = 'internal scratch']
  %s0 = inlined_call_operand.vmem [shape: f32[512,32], index: 0, kind: input, shape index: {}]
  %s1 = inlined_call_operand.vmem [shape: f32[32,64], index: 1, kind: input, shape index: {}]
  %s2 = inlined_call_operand.vmem [shape: f32[1,64], index: 2, kind: input, shape index: {}]
  %s3 = inlined_call_operand.vmem [shape: f32[64,32], index: 3, kind: input, shape index: {}]
  %s4 = inlined_call_operand.vmem [shape: f32[1,32], index: 4, kind: input, shape index: {}]
  %s5 = inlined_call_operand.vmem [shape: f32[32,128], index: 5, kind: input, shape index: {}]
  %s6 = inlined_call_operand.vmem [shape: f32[1,128], index: 6, kind: input, shape index: {}]
  %s7 = inlined_call_operand.vmem [shape: f32[32,16], index: 7, kind: input, shape index: {}]
  %s8 = inlined_call_operand.vmem [shape: f32[1,16], index: 8, kind: input, shape index: {}]
  %s9 = inlined_call_operand.hbm [shape: f32[2,16], index: 9, kind: output, shape index: {}]
  %s10 = sld [smem:[#allocation0]]
  $region46: #{cnnrnn_forward.1} parent=0
    _
  %s12 = ssub.s32 1, %s10
  %s13 = scalar_select 0, %s12, %s10
  $region1: #{cnnrnn_forward.1} parent=0
    #allocation2 [shape = 'u8[1024]{0}', space=vmem, size = 0x400, scoped, tag = 'output window, operand 0, single buffered']
    #allocation3 [shape = 's32[1]{0}', space=sflag, size = 0x4, scoped, tag = 'scoped memory for cnnrnn_forward.1']
    %14 = vsyncpa [#allocation3], 0
    // Predicated region
    $region2: #{cnnrnn_forward.1} parent=1 // pred_check
      _
    $region3: #{cnnrnn_forward.1} parent=1 // pred_check_branch
      %16 = sbr.rel (0) target = $region5
    $region4: #{cnnrnn_forward.1} parent=1 // pred_region
      _
    $region5: #{cnnrnn_forward.1} parent=1 // pred_fallthru
      _
    // Predicated region
    $region6: #{cnnrnn_forward.1} parent=1 // pred_check
      _
    $region7: #{cnnrnn_forward.1} parent=1 // pred_check_branch
      %18 = sbr.rel (0) target = $region9
    $region8: #{cnnrnn_forward.1} parent=1 // pred_region
      _
    $region9: #{cnnrnn_forward.1} parent=1 // pred_fallthru
      _
    // Predicated region
    $region10: #{cnnrnn_forward.1} parent=1 // pred_check
      _
    $region11: #{cnnrnn_forward.1} parent=1 // pred_check_branch
      %20 = sbr.rel (0) target = $region13
    $region12: #{cnnrnn_forward.1} parent=1 // pred_region
      _
    $region13: #{cnnrnn_forward.1} parent=1 // pred_fallthru
      _
    // Predicated region
    $region14: #{cnnrnn_forward.1} parent=1 // pred_check
      _
    $region15: #{cnnrnn_forward.1} parent=1 // pred_check_branch
      %22 = sbr.rel (0) target = $region17
    $region16: #{cnnrnn_forward.1} parent=1 // pred_region
      _
    $region17: #{cnnrnn_forward.1} parent=1 // pred_fallthru
      _
    // Predicated region
    $region18: #{cnnrnn_forward.1} parent=1 // pred_check
      _
    $region19: #{cnnrnn_forward.1} parent=1 // pred_check_branch
      %24 = sbr.rel (0) target = $region21
    $region20: #{cnnrnn_forward.1} parent=1 // pred_region
      _
    $region21: #{cnnrnn_forward.1} parent=1 // pred_fallthru
      _
    // Predicated region
    $region22: #{cnnrnn_forward.1} parent=1 // pred_check
      _
    $region23: #{cnnrnn_forward.1} parent=1 // pred_check_branch
      %26 = sbr.rel (0) target = $region25
    $region24: #{cnnrnn_forward.1} parent=1 // pred_region
      _
    $region25: #{cnnrnn_forward.1} parent=1 // pred_fallthru
      _
    // Predicated region
    $region26: #{cnnrnn_forward.1} parent=1 // pred_check
      _
    $region27: #{cnnrnn_forward.1} parent=1 // pred_check_branch
      %28 = sbr.rel (0) target = $region29
    $region28: #{cnnrnn_forward.1} parent=1 // pred_region
      _
    $region29: #{cnnrnn_forward.1} parent=1 // pred_fallthru
      _
    // Predicated region
    $region30: #{cnnrnn_forward.1} parent=1 // pred_check
      _
    $region31: #{cnnrnn_forward.1} parent=1 // pred_check_branch
      %30 = sbr.rel (0) target = $region33
    $region32: #{cnnrnn_forward.1} parent=1 // pred_region
      _
    $region33: #{cnnrnn_forward.1} parent=1 // pred_fallthru
      _
    // Predicated region
    $region34: #{cnnrnn_forward.1} parent=1 // pred_check
      _
    $region35: #{cnnrnn_forward.1} parent=1 // pred_check_branch
      %32 = sbr.rel (0) target = $region37
    $region36: #{cnnrnn_forward.1} parent=1 // pred_region
      _
    $region37: #{cnnrnn_forward.1} parent=1 // pred_fallthru
      _
    %v33 = vld [vmem:[%s0] sm:$0xff]
    %v34 = vld [vmem:[%s0 + $0x8] sm:$0xff]
    %v35 = vld [vmem:[%s0 + $0x10] sm:$0xff]
    %v36 = vld [vmem:[%s0 + $0x18] sm:$0xff]
    %v37 = vld [vmem:[%s0 + $0x20] sm:$0xff]
    %v38 = vld [vmem:[%s0 + $0x28] sm:$0xff]
    %v39 = vld [vmem:[%s0 + $0x30] sm:$0xff]
    %v40 = vld [vmem:[%s0 + $0x38] sm:$0xff]
    %v41 = vld [vmem:[%s0 + $0x40] sm:$0xff]
    %v42 = vld [vmem:[%s0 + $0x48] sm:$0xff]
    %v43 = vld [vmem:[%s0 + $0x50] sm:$0xff]
    %v44 = vld [vmem:[%s0 + $0x58] sm:$0xff]
    %v45 = vld [vmem:[%s0 + $0x60] sm:$0xff]
    %v46 = vld [vmem:[%s0 + $0x68] sm:$0xff]
    %v47 = vld [vmem:[%s0 + $0x70] sm:$0xff]
    %v48 = vld [vmem:[%s0 + $0x78] sm:$0xff]
    %v49 = vld [vmem:[%s0 + $0x80] sm:$0xff]
    %v50 = vld [vmem:[%s0 + $0x88] sm:$0xff]
    %v51 = vld [vmem:[%s0 + $0x90] sm:$0xff]
    %v52 = vld [vmem:[%s0 + $0x98] sm:$0xff]
    %v53 = vld [vmem:[%s0 + $0xa0] sm:$0xff]
    %v54 = vld [vmem:[%s0 + $0xa8] sm:$0xff]
    %v55 = vld [vmem:[%s0 + $0xb0] sm:$0xff]
    %v56 = vld [vmem:[%s0 + $0xb8] sm:$0xff]
    %v57 = vld [vmem:[%s0 + $0xc0] sm:$0xff]
    %v58 = vld [vmem:[%s0 + $0xc8] sm:$0xff]
    %v59 = vld [vmem:[%s0 + $0xd0] sm:$0xff]
    %v60 = vld [vmem:[%s0 + $0xd8] sm:$0xff]
    %v61 = vld [vmem:[%s0 + $0xe0] sm:$0xff]
    %v62 = vld [vmem:[%s0 + $0xe8] sm:$0xff]
    %v63 = vld [vmem:[%s0 + $0xf0] sm:$0xff]
    %v64 = vld [vmem:[%s0 + $0xf8] sm:$0xff]
    %v65 = vld [vmem:[%s0 + $0x100] sm:$0xff]
    %v66 = vld [vmem:[%s0 + $0x108] sm:$0xff]
    %v67 = vld [vmem:[%s0 + $0x110] sm:$0xff]
    %v68 = vld [vmem:[%s0 + $0x118] sm:$0xff]
    %v69 = vld [vmem:[%s0 + $0x120] sm:$0xff]
    %v70 = vld [vmem:[%s0 + $0x128] sm:$0xff]
    %v71 = vld [vmem:[%s0 + $0x130] sm:$0xff]
    %v72 = vld [vmem:[%s0 + $0x138] sm:$0xff]
    %v73 = vld [vmem:[%s0 + $0x140] sm:$0xff]
    %v74 = vld [vmem:[%s0 + $0x148] sm:$0xff]
    %v75 = vld [vmem:[%s0 + $0x150] sm:$0xff]
    %v76 = vld [vmem:[%s0 + $0x158] sm:$0xff]
    %v77 = vld [vmem:[%s0 + $0x160] sm:$0xff]
    %v78 = vld [vmem:[%s0 + $0x168] sm:$0xff]
    %v79 = vld [vmem:[%s0 + $0x170] sm:$0xff]
    %v80 = vld [vmem:[%s0 + $0x178] sm:$0xff]
    %v81 = vld [vmem:[%s0 + $0x180] sm:$0xff]
    %v82 = vld [vmem:[%s0 + $0x188] sm:$0xff]
    %v83 = vld [vmem:[%s0 + $0x190] sm:$0xff]
    %v84 = vld [vmem:[%s0 + $0x198] sm:$0xff]
    %v85 = vld [vmem:[%s0 + $0x1a0] sm:$0xff]
    %v86 = vld [vmem:[%s0 + $0x1a8] sm:$0xff]
    %v87 = vld [vmem:[%s0 + $0x1b0] sm:$0xff]
    %v88 = vld [vmem:[%s0 + $0x1b8] sm:$0xff]
    %v89 = vld [vmem:[%s0 + $0x1c0] sm:$0xff]
    %v90 = vld [vmem:[%s0 + $0x1c8] sm:$0xff]
    %v91 = vld [vmem:[%s0 + $0x1d0] sm:$0xff]
    %v92 = vld [vmem:[%s0 + $0x1d8] sm:$0xff]
    %v93 = vld [vmem:[%s0 + $0x1e0] sm:$0xff]
    %v94 = vld [vmem:[%s0 + $0x1e8] sm:$0xff]
    %v95 = vld [vmem:[%s0 + $0x1f0] sm:$0xff]
    %v96 = vld [vmem:[%s0 + $0x1f8] sm:$0xff]
    %v97 = vld [vmem:[%s1] sm:$0xff]
    %v98 = vld [vmem:[%s1 + $0x8] sm:$0xff]
    %v99 = vld [vmem:[%s1 + $0x10] sm:$0xff]
    %v100 = vld [vmem:[%s1 + $0x18] sm:$0xff]
    %v101 = vld [vmem:[%s2] sm:$0x1]
    %v103 = vlaneseq
    %v104 = vshrl.u32 %v103, 7
    %v105 = vsub.s32 0, %v104
    %v106 = vrot.slane %v101, %v105
    %vm108 = vcmask 261120
    %v110 = vsel %vm108, %v33, 0
    %v113 = vsel %vm108, %v34, 0
    %v116 = vsel %vm108, %v35, 0
    %v119 = vsel %vm108, %v36, 0
    %v122 = vsel %vm108, %v37, 0
    %v125 = vsel %vm108, %v38, 0
    %v128 = vsel %vm108, %v39, 0
    %v131 = vsel %vm108, %v40, 0
    %v134 = vsel %vm108, %v41, 0
    %v137 = vsel %vm108, %v42, 0
    %v140 = vsel %vm108, %v43, 0
    %v143 = vsel %vm108, %v44, 0
    %v146 = vsel %vm108, %v45, 0
    %v149 = vsel %vm108, %v46, 0
    %v152 = vsel %vm108, %v47, 0
    %v155 = vsel %vm108, %v48, 0
    %v158 = vsel %vm108, %v49, 0
    %v161 = vsel %vm108, %v50, 0
    %v164 = vsel %vm108, %v51, 0
    %v167 = vsel %vm108, %v52, 0
    %v170 = vsel %vm108, %v53, 0
    %v173 = vsel %vm108, %v54, 0
    %v176 = vsel %vm108, %v55, 0
    %v179 = vsel %vm108, %v56, 0
    %v182 = vsel %vm108, %v57, 0
    %v185 = vsel %vm108, %v58, 0
    %v188 = vsel %vm108, %v59, 0
    %v191 = vsel %vm108, %v60, 0
    %v194 = vsel %vm108, %v61, 0
    %v197 = vsel %vm108, %v62, 0
    %v200 = vsel %vm108, %v63, 0
    %v203 = vsel %vm108, %v64, 0
    %v206 = vsel %vm108, %v65, 0
    %v209 = vsel %vm108, %v66, 0
    %v212 = vsel %vm108, %v67, 0
    %v215 = vsel %vm108, %v68, 0
    %v218 = vsel %vm108, %v69, 0
    %v221 = vsel %vm108, %v70, 0
    %v224 = vsel %vm108, %v71, 0
    %v227 = vsel %vm108, %v72, 0
    %v230 = vsel %vm108, %v73, 0
    %v233 = vsel %vm108, %v74, 0
    %v236 = vsel %vm108, %v75, 0
    %v239 = vsel %vm108, %v76, 0
    %v242 = vsel %vm108, %v77, 0
    %v245 = vsel %vm108, %v78, 0
    %v248 = vsel %vm108, %v79, 0
    %v251 = vsel %vm108, %v80, 0
    %v254 = vsel %vm108, %v81, 0
    %v257 = vsel %vm108, %v82, 0
    %v260 = vsel %vm108, %v83, 0
    %v263 = vsel %vm108, %v84, 0
    %v266 = vsel %vm108, %v85, 0
    %v269 = vsel %vm108, %v86, 0
    %v272 = vsel %vm108, %v87, 0
    %v275 = vsel %vm108, %v88, 0
    %v278 = vsel %vm108, %v89, 0
    %v281 = vsel %vm108, %v90, 0
    %v284 = vsel %vm108, %v91, 0
    %v287 = vsel %vm108, %v92, 0
    %v290 = vsel %vm108, %v93, 0
    %v293 = vsel %vm108, %v94, 0
    %v296 = vsel %vm108, %v95, 0
    %v299 = vsel %vm108, %v96, 0
    %301 = vmatprep.subr.mxu0 0.0
    %302 = vmatpush1.msra.mxu0 0.0
    %303 = vmatprep.subr.mxu0 0.0
    %304 = vmatpush1.msra.mxu0 0.0
    %305 = vmatprep.subr.mxu0 0.0
    %306 = vmatpush1.msra.mxu0 0.0
    %307 = vmatprep.subr.mxu0 0.0
    %308 = vmatpush1.msra.mxu0 0.0
    %309 = vmatprep.subr.mxu0 0.0
    %310 = vmatpush1.msra.mxu0 0.0
    %311 = vmatprep.subr.mxu0 0.0
    %312 = vmatpush1.msra.mxu0 0.0
    %313 = vmatprep.subr.mxu0 0.0
    %314 = vmatpush1.msra.mxu0 0.0
    %315 = vmatprep.subr.mxu0 0.0
    %316 = vmatpush1.msra.mxu0 0.0
    %317 = vmatprep.subr.mxu0 0.0
    %318 = vmatpush1.msra.mxu0 0.0
    %319 = vmatprep.subr.mxu0 0.0
    %320 = vmatpush1.msra.mxu0 0.0
    %321 = vmatprep.subr.mxu0 0.0
    %322 = vmatpush1.msra.mxu0 0.0
    %323 = vmatprep.subr.mxu0 0.0
    %324 = vmatpush1.msra.mxu0 0.0
    %325 = vmatprep.subr.mxu0 0.0
    %326 = vmatpush1.msra.mxu0 %v100
    %327 = vmatprep.subr.mxu0 0.0
    %328 = vmatpush1.msra.mxu0 %v99
    %329 = vmatprep.subr.mxu0 0.0
    %330 = vmatpush1.msra.mxu0 %v98
    %331 = vmatprep.subr.mxu0 0.0
    %332 = vmatpush1.msra.mxu0 %v97
    %333 = vmatprep.subr.mxu0 0.0
    %334 = vmatpush2.msra.mxu0 0.0
    %335 = vmatprep.subr.mxu0 0.0
    %336 = vmatpush2.msra.mxu0 0.0
    %337 = vmatprep.subr.mxu0 0.0
    %338 = vmatpush2.msra.mxu0 0.0
    %339 = vmatprep.subr.mxu0 0.0
    %340 = vmatpush2.msra.mxu0 0.0
    %341 = vmatprep.subr.mxu0 0.0
    %342 = vmatpush2.msra.mxu0 0.0
    %343 = vmatprep.subr.mxu0 0.0
    %344 = vmatpush2.msra.mxu0 0.0
    %345 = vmatprep.subr.mxu0 0.0
    %346 = vmatpush2.msra.mxu0 0.0
    %347 = vmatprep.subr.mxu0 0.0
    %348 = vmatpush2.msra.mxu0 0.0
    %349 = vmatprep.subr.mxu0 0.0
    %350 = vmatpush2.msra.mxu0 0.0
    %351 = vmatprep.subr.mxu0 0.0
    %352 = vmatpush2.msra.mxu0 0.0
    %353 = vmatprep.subr.mxu0 0.0
    %354 = vmatpush2.msra.mxu0 0.0
    %355 = vmatprep.subr.mxu0 0.0
    %356 = vmatpush2.msra.mxu0 0.0
    %357 = vmatprep.subr.mxu0 0.0
    %358 = vmatpush2.msra.mxu0 0.0
    %359 = vmatprep.subr.mxu0 0.0
    %360 = vmatpush2.msra.mxu0 0.0
    %361 = vmatprep.subr.mxu0 0.0
    %362 = vmatpush2.msra.mxu0 0.0
    %363 = vmatprep.subr.mxu0 0.0
    %364 = vmatpush2.msra.mxu0 0.0
    %365 = vmatprep.mubr.f32.mxu0 0.0
    %366 = vmatmul.mubr.f32.gmra.mxu0 %v110
    %v367 = vpop.f32.mrf.mxu0
    %v368 = vadd.f32 %v106, %v367
    %v369 = vpop.f32.mrf.mxu0
    %370 = vmatprep.mubr.f32.mxu0 0.0
    %371 = vmatmul.mubr.f32.gmra.mxu0 %v113
    %v372 = vpop.f32.mrf.mxu0
    %v373 = vadd.f32 %v106, %v372
    %v374 = vpop.f32.mrf.mxu0
    %375 = vmatprep.mubr.f32.mxu0 0.0
    %376 = vmatmul.mubr.f32.gmra.mxu0 %v116
    %v377 = vpop.f32.mrf.mxu0
    %v378 = vadd.f32 %v106, %v377
    %v379 = vpop.f32.mrf.mxu0
    %380 = vmatprep.mubr.f32.mxu0 0.0
    %381 = vmatmul.mubr.f32.gmra.mxu0 %v119
    %v382 = vpop.f32.mrf.mxu0
    %v383 = vadd.f32 %v106, %v382
    %v384 = vpop.f32.mrf.mxu0
    %385 = vmatprep.mubr.f32.mxu0 0.0
    %386 = vmatmul.mubr.f32.gmra.mxu0 %v122
    %v387 = vpop.f32.mrf.mxu0
    %v388 = vadd.f32 %v106, %v387
    %v389 = vpop.f32.mrf.mxu0
    %390 = vmatprep.mubr.f32.mxu0 0.0
    %391 = vmatmul.mubr.f32.gmra.mxu0 %v125
    %v392 = vpop.f32.mrf.mxu0
    %v393 = vadd.f32 %v106, %v392
    %v394 = vpop.f32.mrf.mxu0
    %395 = vmatprep.mubr.f32.mxu0 0.0
    %396 = vmatmul.mubr.f32.gmra.mxu0 %v128
    %v397 = vpop.f32.mrf.mxu0
    %v398 = vadd.f32 %v106, %v397
    %v399 = vpop.f32.mrf.mxu0
    %400 = vmatprep.mubr.f32.mxu0 0.0
    %401 = vmatmul.mubr.f32.gmra.mxu0 %v131
    %v402 = vpop.f32.mrf.mxu0
    %v403 = vadd.f32 %v106, %v402
    %v404 = vpop.f32.mrf.mxu0
    %405 = vmatprep.mubr.f32.mxu0 0.0
    %406 = vmatmul.mubr.f32.gmra.mxu0 %v134
    %v407 = vpop.f32.mrf.mxu0
    %v408 = vadd.f32 %v106, %v407
    %v409 = vpop.f32.mrf.mxu0
    %410 = vmatprep.mubr.f32.mxu0 0.0
    %411 = vmatmul.mubr.f32.gmra.mxu0 %v137
    %v412 = vpop.f32.mrf.mxu0
    %v413 = vadd.f32 %v106, %v412
    %v414 = vpop.f32.mrf.mxu0
    %415 = vmatprep.mubr.f32.mxu0 0.0
    %416 = vmatmul.mubr.f32.gmra.mxu0 %v140
    %v417 = vpop.f32.mrf.mxu0
    %v418 = vadd.f32 %v106, %v417
    %v419 = vpop.f32.mrf.mxu0
    %420 = vmatprep.mubr.f32.mxu0 0.0
    %421 = vmatmul.mubr.f32.gmra.mxu0 %v143
    %v422 = vpop.f32.mrf.mxu0
    %v423 = vadd.f32 %v106, %v422
    %v424 = vpop.f32.mrf.mxu0
    %425 = vmatprep.mubr.f32.mxu0 0.0
    %426 = vmatmul.mubr.f32.gmra.mxu0 %v146
    %v427 = vpop.f32.mrf.mxu0
    %v428 = vadd.f32 %v106, %v427
    %v429 = vpop.f32.mrf.mxu0
    %430 = vmatprep.mubr.f32.mxu0 0.0
    %431 = vmatmul.mubr.f32.gmra.mxu0 %v149
    %v432 = vpop.f32.mrf.mxu0
    %v433 = vadd.f32 %v106, %v432
    %v434 = vpop.f32.mrf.mxu0
    %435 = vmatprep.mubr.f32.mxu0 0.0
    %436 = vmatmul.mubr.f32.gmra.mxu0 %v152
    %v437 = vpop.f32.mrf.mxu0
    %v438 = vadd.f32 %v106, %v437
    %v439 = vpop.f32.mrf.mxu0
    %440 = vmatprep.mubr.f32.mxu0 0.0
    %441 = vmatmul.mubr.f32.gmra.mxu0 %v155
    %v442 = vpop.f32.mrf.mxu0
    %v443 = vadd.f32 %v106, %v442
    %v444 = vpop.f32.mrf.mxu0
    %445 = vmatprep.mubr.f32.mxu0 0.0
    %446 = vmatmul.mubr.f32.gmra.mxu0 %v158
    %v447 = vpop.f32.mrf.mxu0
    %v448 = vadd.f32 %v106, %v447
    %v449 = vpop.f32.mrf.mxu0
    %450 = vmatprep.mubr.f32.mxu0 0.0
    %451 = vmatmul.mubr.f32.gmra.mxu0 %v161
    %v452 = vpop.f32.mrf.mxu0
    %v453 = vadd.f32 %v106, %v452
    %v454 = vpop.f32.mrf.mxu0
    %455 = vmatprep.mubr.f32.mxu0 0.0
    %456 = vmatmul.mubr.f32.gmra.mxu0 %v164
    %v457 = vpop.f32.mrf.mxu0
    %v458 = vadd.f32 %v106, %v457
    %v459 = vpop.f32.mrf.mxu0
    %460 = vmatprep.mubr.f32.mxu0 0.0
    %461 = vmatmul.mubr.f32.gmra.mxu0 %v167
    %v462 = vpop.f32.mrf.mxu0
    %v463 = vadd.f32 %v106, %v462
    %v464 = vpop.f32.mrf.mxu0
    %465 = vmatprep.mubr.f32.mxu0 0.0
    %466 = vmatmul.mubr.f32.gmra.mxu0 %v170
    %v467 = vpop.f32.mrf.mxu0
    %v468 = vadd.f32 %v106, %v467
    %v469 = vpop.f32.mrf.mxu0
    %470 = vmatprep.mubr.f32.mxu0 0.0
    %471 = vmatmul.mubr.f32.gmra.mxu0 %v173
    %v472 = vpop.f32.mrf.mxu0
    %v473 = vadd.f32 %v106, %v472
    %v474 = vpop.f32.mrf.mxu0
    %475 = vmatprep.mubr.f32.mxu0 0.0
    %476 = vmatmul.mubr.f32.gmra.mxu0 %v176
    %v477 = vpop.f32.mrf.mxu0
    %v478 = vadd.f32 %v106, %v477
    %v479 = vpop.f32.mrf.mxu0
    %480 = vmatprep.mubr.f32.mxu0 0.0
    %481 = vmatmul.mubr.f32.gmra.mxu0 %v179
    %v482 = vpop.f32.mrf.mxu0
    %v483 = vadd.f32 %v106, %v482
    %v484 = vpop.f32.mrf.mxu0
    %485 = vmatprep.mubr.f32.mxu0 0.0
    %486 = vmatmul.mubr.f32.gmra.mxu0 %v182
    %v487 = vpop.f32.mrf.mxu0
    %v488 = vadd.f32 %v106, %v487
    %v489 = vpop.f32.mrf.mxu0
    %490 = vmatprep.mubr.f32.mxu0 0.0
    %491 = vmatmul.mubr.f32.gmra.mxu0 %v185
    %v492 = vpop.f32.mrf.mxu0
    %v493 = vadd.f32 %v106, %v492
    %v494 = vpop.f32.mrf.mxu0
    %495 = vmatprep.mubr.f32.mxu0 0.0
    %496 = vmatmul.mubr.f32.gmra.mxu0 %v188
    %v497 = vpop.f32.mrf.mxu0
    %v498 = vadd.f32 %v106, %v497
    %v499 = vpop.f32.mrf.mxu0
    %500 = vmatprep.mubr.f32.mxu0 0.0
    %501 = vmatmul.mubr.f32.gmra.mxu0 %v191
    %v502 = vpop.f32.mrf.mxu0
    %v503 = vadd.f32 %v106, %v502
    %v504 = vpop.f32.mrf.mxu0
    %505 = vmatprep.mubr.f32.mxu0 0.0
    %506 = vmatmul.mubr.f32.gmra.mxu0 %v194
    %v507 = vpop.f32.mrf.mxu0
    %v508 = vadd.f32 %v106, %v507
    %v509 = vpop.f32.mrf.mxu0
    %510 = vmatprep.mubr.f32.mxu0 0.0
    %511 = vmatmul.mubr.f32.gmra.mxu0 %v197
    %v512 = vpop.f32.mrf.mxu0
    %v513 = vadd.f32 %v106, %v512
    %v514 = vpop.f32.mrf.mxu0
    %515 = vmatprep.mubr.f32.mxu0 0.0
    %516 = vmatmul.mubr.f32.gmra.mxu0 %v200
    %v517 = vpop.f32.mrf.mxu0
    %v518 = vadd.f32 %v106, %v517
    %v519 = vpop.f32.mrf.mxu0
    %520 = vmatprep.mubr.f32.mxu0 0.0
    %521 = vmatmul.mubr.f32.gmra.mxu0 %v203
    %v522 = vpop.f32.mrf.mxu0
    %v523 = vadd.f32 %v106, %v522
    %v524 = vpop.f32.mrf.mxu0
    %525 = vmatprep.mubr.f32.mxu0 0.0
    %526 = vmatmul.mubr.f32.gmra.mxu0 %v206
    %v527 = vpop.f32.mrf.mxu0
    %v528 = vadd.f32 %v106, %v527
    %v529 = vpop.f32.mrf.mxu0
    %530 = vmatprep.mubr.f32.mxu0 0.0
    %531 = vmatmul.mubr.f32.gmra.mxu0 %v209
    %v532 = vpop.f32.mrf.mxu0
    %v533 = vadd.f32 %v106, %v532
    %v534 = vpop.f32.mrf.mxu0
    %535 = vmatprep.mubr.f32.mxu0 0.0
    %536 = vmatmul.mubr.f32.gmra.mxu0 %v212
    %v537 = vpop.f32.mrf.mxu0
    %v538 = vadd.f32 %v106, %v537
    %v539 = vpop.f32.mrf.mxu0
    %540 = vmatprep.mubr.f32.mxu0 0.0
    %541 = vmatmul.mubr.f32.gmra.mxu0 %v215
    %v542 = vpop.f32.mrf.mxu0
    %v543 = vadd.f32 %v106, %v542
    %v544 = vpop.f32.mrf.mxu0
    %545 = vmatprep.mubr.f32.mxu0 0.0
    %546 = vmatmul.mubr.f32.gmra.mxu0 %v218
    %v547 = vpop.f32.mrf.mxu0
    %v548 = vadd.f32 %v106, %v547
    %v549 = vpop.f32.mrf.mxu0
    %550 = vmatprep.mubr.f32.mxu0 0.0
    %551 = vmatmul.mubr.f32.gmra.mxu0 %v221
    %v552 = vpop.f32.mrf.mxu0
    %v553 = vadd.f32 %v106, %v552
    %v554 = vpop.f32.mrf.mxu0
    %555 = vmatprep.mubr.f32.mxu0 0.0
    %556 = vmatmul.mubr.f32.gmra.mxu0 %v224
    %v557 = vpop.f32.mrf.mxu0
    %v558 = vadd.f32 %v106, %v557
    %v559 = vpop.f32.mrf.mxu0
    %560 = vmatprep.mubr.f32.mxu0 0.0
    %561 = vmatmul.mubr.f32.gmra.mxu0 %v227
    %v562 = vpop.f32.mrf.mxu0
    %v563 = vadd.f32 %v106, %v562
    %v564 = vpop.f32.mrf.mxu0
    %565 = vmatprep.mubr.f32.mxu0 0.0
    %566 = vmatmul.mubr.f32.gmra.mxu0 %v230
    %v567 = vpop.f32.mrf.mxu0
    %v568 = vadd.f32 %v106, %v567
    %v569 = vpop.f32.mrf.mxu0
    %570 = vmatprep.mubr.f32.mxu0 0.0
    %571 = vmatmul.mubr.f32.gmra.mxu0 %v233
    %v572 = vpop.f32.mrf.mxu0
    %v573 = vadd.f32 %v106, %v572
    %v574 = vpop.f32.mrf.mxu0
    %575 = vmatprep.mubr.f32.mxu0 0.0
    %576 = vmatmul.mubr.f32.gmra.mxu0 %v236
    %v577 = vpop.f32.mrf.mxu0
    %v578 = vadd.f32 %v106, %v577
    %v579 = vpop.f32.mrf.mxu0
    %580 = vmatprep.mubr.f32.mxu0 0.0
    %581 = vmatmul.mubr.f32.gmra.mxu0 %v239
    %v582 = vpop.f32.mrf.mxu0
    %v583 = vadd.f32 %v106, %v582
    %v584 = vpop.f32.mrf.mxu0
    %585 = vmatprep.mubr.f32.mxu0 0.0
    %586 = vmatmul.mubr.f32.gmra.mxu0 %v242
    %v587 = vpop.f32.mrf.mxu0
    %v588 = vadd.f32 %v106, %v587
    %v589 = vpop.f32.mrf.mxu0
    %590 = vmatprep.mubr.f32.mxu0 0.0
    %591 = vmatmul.mubr.f32.gmra.mxu0 %v245
    %v592 = vpop.f32.mrf.mxu0
    %v593 = vadd.f32 %v106, %v592
    %v594 = vpop.f32.mrf.mxu0
    %595 = vmatprep.mubr.f32.mxu0 0.0
    %596 = vmatmul.mubr.f32.gmra.mxu0 %v248
    %v597 = vpop.f32.mrf.mxu0
    %v598 = vadd.f32 %v106, %v597
    %v599 = vpop.f32.mrf.mxu0
    %600 = vmatprep.mubr.f32.mxu0 0.0
    %601 = vmatmul.mubr.f32.gmra.mxu0 %v251
    %v602 = vpop.f32.mrf.mxu0
    %v603 = vadd.f32 %v106, %v602
    %v604 = vpop.f32.mrf.mxu0
    %605 = vmatprep.mubr.f32.mxu0 0.0
    %606 = vmatmul.mubr.f32.gmra.mxu0 %v254
    %v607 = vpop.f32.mrf.mxu0
    %v608 = vadd.f32 %v106, %v607
    %v609 = vpop.f32.mrf.mxu0
    %610 = vmatprep.mubr.f32.mxu0 0.0
    %611 = vmatmul.mubr.f32.gmra.mxu0 %v257
    %v612 = vpop.f32.mrf.mxu0
    %v613 = vadd.f32 %v106, %v612
    %v614 = vpop.f32.mrf.mxu0
    %615 = vmatprep.mubr.f32.mxu0 0.0
    %616 = vmatmul.mubr.f32.gmra.mxu0 %v260
    %v617 = vpop.f32.mrf.mxu0
    %v618 = vadd.f32 %v106, %v617
    %v619 = vpop.f32.mrf.mxu0
    %620 = vmatprep.mubr.f32.mxu0 0.0
    %621 = vmatmul.mubr.f32.gmra.mxu0 %v263
    %v622 = vpop.f32.mrf.mxu0
    %v623 = vadd.f32 %v106, %v622
    %v624 = vpop.f32.mrf.mxu0
    %625 = vmatprep.mubr.f32.mxu0 0.0
    %626 = vmatmul.mubr.f32.gmra.mxu0 %v266
    %v627 = vpop.f32.mrf.mxu0
    %v628 = vadd.f32 %v106, %v627
    %v629 = vpop.f32.mrf.mxu0
    %630 = vmatprep.mubr.f32.mxu0 0.0
    %631 = vmatmul.mubr.f32.gmra.mxu0 %v269
    %v632 = vpop.f32.mrf.mxu0
    %v633 = vadd.f32 %v106, %v632
    %v634 = vpop.f32.mrf.mxu0
    %635 = vmatprep.mubr.f32.mxu0 0.0
    %636 = vmatmul.mubr.f32.gmra.mxu0 %v272
    %v637 = vpop.f32.mrf.mxu0
    %v638 = vadd.f32 %v106, %v637
    %v639 = vpop.f32.mrf.mxu0
    %640 = vmatprep.mubr.f32.mxu0 0.0
    %641 = vmatmul.mubr.f32.gmra.mxu0 %v275
    %v642 = vpop.f32.mrf.mxu0
    %v643 = vadd.f32 %v106, %v642
    %v644 = vpop.f32.mrf.mxu0
    %645 = vmatprep.mubr.f32.mxu0 0.0
    %646 = vmatmul.mubr.f32.gmra.mxu0 %v278
    %v647 = vpop.f32.mrf.mxu0
    %v648 = vadd.f32 %v106, %v647
    %v649 = vpop.f32.mrf.mxu0
    %650 = vmatprep.mubr.f32.mxu0 0.0
    %651 = vmatmul.mubr.f32.gmra.mxu0 %v281
    %v652 = vpop.f32.mrf.mxu0
    %v653 = vadd.f32 %v106, %v652
    %v654 = vpop.f32.mrf.mxu0
    %655 = vmatprep.mubr.f32.mxu0 0.0
    %656 = vmatmul.mubr.f32.gmra.mxu0 %v284
    %v657 = vpop.f32.mrf.mxu0
    %v658 = vadd.f32 %v106, %v657
    %v659 = vpop.f32.mrf.mxu0
    %660 = vmatprep.mubr.f32.mxu0 0.0
    %661 = vmatmul.mubr.f32.gmra.mxu0 %v287
    %v662 = vpop.f32.mrf.mxu0
    %v663 = vadd.f32 %v106, %v662
    %v664 = vpop.f32.mrf.mxu0
    %665 = vmatprep.mubr.f32.mxu0 0.0
    %666 = vmatmul.mubr.f32.gmra.mxu0 %v290
    %v667 = vpop.f32.mrf.mxu0
    %v668 = vadd.f32 %v106, %v667
    %v669 = vpop.f32.mrf.mxu0
    %670 = vmatprep.mubr.f32.mxu0 0.0
    %671 = vmatmul.mubr.f32.gmra.mxu0 %v293
    %v672 = vpop.f32.mrf.mxu0
    %v673 = vadd.f32 %v106, %v672
    %v674 = vpop.f32.mrf.mxu0
    %675 = vmatprep.mubr.f32.mxu0 0.0
    %676 = vmatmul.mubr.f32.gmra.mxu0 %v296
    %v677 = vpop.f32.mrf.mxu0
    %v678 = vadd.f32 %v106, %v677
    %v679 = vpop.f32.mrf.mxu0
    %680 = vmatprep.mubr.f32.mxu0 0.0
    %681 = vmatmul.mubr.f32.gmra.mxu0 %v299
    %v682 = vpop.f32.mrf.mxu0
    %v683 = vadd.f32 %v106, %v682
    %v684 = vpop.f32.mrf.mxu0
    %685 = vdwg.mxu0
    %v686 = vmax.f32 %v368, 0.0
    %v687 = vmax.f32 %v373, 0.0
    %v688 = vmax.f32 %v378, 0.0
    %v689 = vmax.f32 %v383, 0.0
    %v690 = vmax.f32 %v388, 0.0
    %v691 = vmax.f32 %v393, 0.0
    %v692 = vmax.f32 %v398, 0.0
    %v693 = vmax.f32 %v403, 0.0
    %v694 = vmax.f32 %v408, 0.0
    %v695 = vmax.f32 %v413, 0.0
    %v696 = vmax.f32 %v418, 0.0
    %v697 = vmax.f32 %v423, 0.0
    %v698 = vmax.f32 %v428, 0.0
    %v699 = vmax.f32 %v433, 0.0
    %v700 = vmax.f32 %v438, 0.0
    %v701 = vmax.f32 %v443, 0.0
    %v702 = vmax.f32 %v448, 0.0
    %v703 = vmax.f32 %v453, 0.0
    %v704 = vmax.f32 %v458, 0.0
    %v705 = vmax.f32 %v463, 0.0
    %v706 = vmax.f32 %v468, 0.0
    %v707 = vmax.f32 %v473, 0.0
    %v708 = vmax.f32 %v478, 0.0
    %v709 = vmax.f32 %v483, 0.0
    %v710 = vmax.f32 %v488, 0.0
    %v711 = vmax.f32 %v493, 0.0
    %v712 = vmax.f32 %v498, 0.0
    %v713 = vmax.f32 %v503, 0.0
    %v714 = vmax.f32 %v508, 0.0
    %v715 = vmax.f32 %v513, 0.0
    %v716 = vmax.f32 %v518, 0.0
    %v717 = vmax.f32 %v523, 0.0
    %v718 = vmax.f32 %v528, 0.0
    %v719 = vmax.f32 %v533, 0.0
    %v720 = vmax.f32 %v538, 0.0
    %v721 = vmax.f32 %v543, 0.0
    %v722 = vmax.f32 %v548, 0.0
    %v723 = vmax.f32 %v553, 0.0
    %v724 = vmax.f32 %v558, 0.0
    %v725 = vmax.f32 %v563, 0.0
    %v726 = vmax.f32 %v568, 0.0
    %v727 = vmax.f32 %v573, 0.0
    %v728 = vmax.f32 %v578, 0.0
    %v729 = vmax.f32 %v583, 0.0
    %v730 = vmax.f32 %v588, 0.0
    %v731 = vmax.f32 %v593, 0.0
    %v732 = vmax.f32 %v598, 0.0
    %v733 = vmax.f32 %v603, 0.0
    %v734 = vmax.f32 %v608, 0.0
    %v735 = vmax.f32 %v613, 0.0
    %v736 = vmax.f32 %v618, 0.0
    %v737 = vmax.f32 %v623, 0.0
    %v738 = vmax.f32 %v628, 0.0
    %v739 = vmax.f32 %v633, 0.0
    %v740 = vmax.f32 %v638, 0.0
    %v741 = vmax.f32 %v643, 0.0
    %v742 = vmax.f32 %v648, 0.0
    %v743 = vmax.f32 %v653, 0.0
    %v744 = vmax.f32 %v658, 0.0
    %v745 = vmax.f32 %v663, 0.0
    %v746 = vmax.f32 %v668, 0.0
    %v747 = vmax.f32 %v673, 0.0
    %v748 = vmax.f32 %v678, 0.0
    %v749 = vmax.f32 %v683, 0.0
    %vm750 = vcmask 523264
    %v751 = vsel %vm750, %v686, 0.0
    %v752 = vsel %vm750, %v687, 0.0
    %v753 = vadd.f32 %v751, %v752
    %v754 = vsel %vm750, %v688, 0.0
    %v755 = vadd.f32 %v753, %v754
    %v756 = vsel %vm750, %v689, 0.0
    %v757 = vadd.f32 %v755, %v756
    %v758 = vsel %vm750, %v690, 0.0
    %v759 = vadd.f32 %v757, %v758
    %v760 = vsel %vm750, %v691, 0.0
    %v761 = vadd.f32 %v759, %v760
    %v762 = vsel %vm750, %v692, 0.0
    %v763 = vadd.f32 %v761, %v762
    %v764 = vsel %vm750, %v693, 0.0
    %v765 = vadd.f32 %v763, %v764
    %v766 = vsel %vm750, %v694, 0.0
    %v767 = vadd.f32 %v765, %v766
    %v768 = vsel %vm750, %v695, 0.0
    %v769 = vadd.f32 %v767, %v768
    %v770 = vsel %vm750, %v696, 0.0
    %v771 = vadd.f32 %v769, %v770
    %v772 = vsel %vm750, %v697, 0.0
    %v773 = vadd.f32 %v771, %v772
    %v774 = vsel %vm750, %v698, 0.0
    %v775 = vadd.f32 %v773, %v774
    %v776 = vsel %vm750, %v699, 0.0
    %v777 = vadd.f32 %v775, %v776
    %v778 = vsel %vm750, %v700, 0.0
    %v779 = vadd.f32 %v777, %v778
    %v780 = vsel %vm750, %v701, 0.0
    %v781 = vadd.f32 %v779, %v780
    %v782 = vsel %vm750, %v702, 0.0
    %v783 = vadd.f32 %v781, %v782
    %v784 = vsel %vm750, %v703, 0.0
    %v785 = vadd.f32 %v783, %v784
    %v786 = vsel %vm750, %v704, 0.0
    %v787 = vadd.f32 %v785, %v786
    %v788 = vsel %vm750, %v705, 0.0
    %v789 = vadd.f32 %v787, %v788
    %v790 = vsel %vm750, %v706, 0.0
    %v791 = vadd.f32 %v789, %v790
    %v792 = vsel %vm750, %v707, 0.0
    %v793 = vadd.f32 %v791, %v792
    %v794 = vsel %vm750, %v708, 0.0
    %v795 = vadd.f32 %v793, %v794
    %v796 = vsel %vm750, %v709, 0.0
    %v797 = vadd.f32 %v795, %v796
    %v798 = vsel %vm750, %v710, 0.0
    %v799 = vadd.f32 %v797, %v798
    %v800 = vsel %vm750, %v711, 0.0
    %v801 = vadd.f32 %v799, %v800
    %v802 = vsel %vm750, %v712, 0.0
    %v803 = vadd.f32 %v801, %v802
    %v804 = vsel %vm750, %v713, 0.0
    %v805 = vadd.f32 %v803, %v804
    %v806 = vsel %vm750, %v714, 0.0
    %v807 = vadd.f32 %v805, %v806
    %v808 = vsel %vm750, %v715, 0.0
    %v809 = vadd.f32 %v807, %v808
    %v810 = vsel %vm750, %v716, 0.0
    %v811 = vadd.f32 %v809, %v810
    %v812 = vsel %vm750, %v717, 0.0
    %v813 = vadd.f32 %v811, %v812
    %v814 = vrot.slane %v813, 4
    %v815 = vadd.f32 %v813, %v814
    %v816 = vrot.slane %v815, 2
    %v817 = vadd.f32 %v815, %v816
    %v818 = vrot.slane %v817, 1
    %v819 = vadd.f32 %v817, %v818
    %v820 = vsel %vm750, %v718, 0.0
    %v821 = vsel %vm750, %v719, 0.0
    %v822 = vadd.f32 %v820, %v821
    %v823 = vsel %vm750, %v720, 0.0
    %v824 = vadd.f32 %v822, %v823
    %v825 = vsel %vm750, %v721, 0.0
    %v826 = vadd.f32 %v824, %v825
    %v827 = vsel %vm750, %v722, 0.0
    %v828 = vadd.f32 %v826, %v827
    %v829 = vsel %vm750, %v723, 0.0
    %v830 = vadd.f32 %v828, %v829
    %v831 = vsel %vm750, %v724, 0.0
    %v832 = vadd.f32 %v830, %v831
    %v833 = vsel %vm750, %v725, 0.0
    %v834 = vadd.f32 %v832, %v833
    %v835 = vsel %vm750, %v726, 0.0
    %v836 = vadd.f32 %v834, %v835
    %v837 = vsel %vm750, %v727, 0.0
    %v838 = vadd.f32 %v836, %v837
    %v839 = vsel %vm750, %v728, 0.0
    %v840 = vadd.f32 %v838, %v839
    %v841 = vsel %vm750, %v729, 0.0
    %v842 = vadd.f32 %v840, %v841
    %v843 = vsel %vm750, %v730, 0.0
    %v844 = vadd.f32 %v842, %v843
    %v845 = vsel %vm750, %v731, 0.0
    %v846 = vadd.f32 %v844, %v845
    %v847 = vsel %vm750, %v732, 0.0
    %v848 = vadd.f32 %v846, %v847
    %v849 = vsel %vm750, %v733, 0.0
    %v850 = vadd.f32 %v848, %v849
    %v851 = vsel %vm750, %v734, 0.0
    %v852 = vadd.f32 %v850, %v851
    %v853 = vsel %vm750, %v735, 0.0
    %v854 = vadd.f32 %v852, %v853
    %v855 = vsel %vm750, %v736, 0.0
    %v856 = vadd.f32 %v854, %v855
    %v857 = vsel %vm750, %v737, 0.0
    %v858 = vadd.f32 %v856, %v857
    %v859 = vsel %vm750, %v738, 0.0
    %v860 = vadd.f32 %v858, %v859
    %v861 = vsel %vm750, %v739, 0.0
    %v862 = vadd.f32 %v860, %v861
    %v863 = vsel %vm750, %v740, 0.0
    %v864 = vadd.f32 %v862, %v863
    %v865 = vsel %vm750, %v741, 0.0
    %v866 = vadd.f32 %v864, %v865
    %v867 = vsel %vm750, %v742, 0.0
    %v868 = vadd.f32 %v866, %v867
    %v869 = vsel %vm750, %v743, 0.0
    %v870 = vadd.f32 %v868, %v869
    %v871 = vsel %vm750, %v744, 0.0
    %v872 = vadd.f32 %v870, %v871
    %v873 = vsel %vm750, %v745, 0.0
    %v874 = vadd.f32 %v872, %v873
    %v875 = vsel %vm750, %v746, 0.0
    %v876 = vadd.f32 %v874, %v875
    %v877 = vsel %vm750, %v747, 0.0
    %v878 = vadd.f32 %v876, %v877
    %v879 = vsel %vm750, %v748, 0.0
    %v880 = vadd.f32 %v878, %v879
    %v881 = vsel %vm750, %v749, 0.0
    %v882 = vadd.f32 %v880, %v881
    %v883 = vrot.slane %v882, 4
    %v884 = vadd.f32 %v882, %v883
    %v885 = vrot.slane %v884, 2
    %v886 = vadd.f32 %v884, %v885
    %v887 = vrot.slane %v886, 1
    %v888 = vadd.f32 %v886, %v887
    %vm889 = vcmask 1040384
    %v890 = vsel %vm889, %v819, %v888
    %v891 = vmul.f32 %v890, 0.00390625
    %v892 = vld [vmem:[%s3] sm:$0xff]
    %v893 = vld [vmem:[%s3 + $0x8] sm:$0xff]
    %v894 = vld [vmem:[%s3 + $0x10] sm:$0xff]
    %v895 = vld [vmem:[%s3 + $0x18] sm:$0xff]
    %v896 = vld [vmem:[%s3 + $0x20] sm:$0xff]
    %v897 = vld [vmem:[%s3 + $0x28] sm:$0xff]
    %v898 = vld [vmem:[%s3 + $0x30] sm:$0xff]
    %v899 = vld [vmem:[%s3 + $0x38] sm:$0xff]
    %v900 = vld [vmem:[%s4] sm:$0x1]
    %v902 = vlaneseq
    %v903 = vshrl.u32 %v902, 7
    %v904 = vsub.s32 0, %v903
    %v905 = vrot.slane %v900, %v904
    %v908 = vsel %vm750, %v891, 0
    %910 = vmatprep.subr.mxu0 0.0
    %911 = vmatpush1.msra.mxu0 0.0
    %912 = vmatprep.subr.mxu0 0.0
    %913 = vmatpush1.msra.mxu0 0.0
    %914 = vmatprep.subr.mxu0 0.0
    %915 = vmatpush1.msra.mxu0 0.0
    %916 = vmatprep.subr.mxu0 0.0
    %917 = vmatpush1.msra.mxu0 0.0
    %918 = vmatprep.subr.mxu0 0.0
    %919 = vmatpush1.msra.mxu0 0.0
    %920 = vmatprep.subr.mxu0 0.0
    %921 = vmatpush1.msra.mxu0 0.0
    %922 = vmatprep.subr.mxu0 0.0
    %923 = vmatpush1.msra.mxu0 0.0
    %924 = vmatprep.subr.mxu0 0.0
    %925 = vmatpush1.msra.mxu0 0.0
    %926 = vmatprep.subr.mxu0 0.0
    %927 = vmatpush1.msra.mxu0 %v899
    %928 = vmatprep.subr.mxu0 0.0
    %929 = vmatpush1.msra.mxu0 %v898
    %930 = vmatprep.subr.mxu0 0.0
    %931 = vmatpush1.msra.mxu0 %v897
    %932 = vmatprep.subr.mxu0 0.0
    %933 = vmatpush1.msra.mxu0 %v896
    %934 = vmatprep.subr.mxu0 0.0
    %935 = vmatpush1.msra.mxu0 %v895
    %936 = vmatprep.subr.mxu0 0.0
    %937 = vmatpush1.msra.mxu0 %v894
    %938 = vmatprep.subr.mxu0 0.0
    %939 = vmatpush1.msra.mxu0 %v893
    %940 = vmatprep.subr.mxu0 0.0
    %941 = vmatpush1.msra.mxu0 %v892
    %942 = vmatprep.subr.mxu0 0.0
    %943 = vmatpush2.msra.mxu0 0.0
    %944 = vmatprep.subr.mxu0 0.0
    %945 = vmatpush2.msra.mxu0 0.0
    %946 = vmatprep.subr.mxu0 0.0
    %947 = vmatpush2.msra.mxu0 0.0
    %948 = vmatprep.subr.mxu0 0.0
    %949 = vmatpush2.msra.mxu0 0.0
    %950 = vmatprep.subr.mxu0 0.0
    %951 = vmatpush2.msra.mxu0 0.0
    %952 = vmatprep.subr.mxu0 0.0
    %953 = vmatpush2.msra.mxu0 0.0
    %954 = vmatprep.subr.mxu0 0.0
    %955 = vmatpush2.msra.mxu0 0.0
    %956 = vmatprep.subr.mxu0 0.0
    %957 = vmatpush2.msra.mxu0 0.0
    %958 = vmatprep.subr.mxu0 0.0
    %959 = vmatpush2.msra.mxu0 0.0
    %960 = vmatprep.subr.mxu0 0.0
    %961 = vmatpush2.msra.mxu0 0.0
    %962 = vmatprep.subr.mxu0 0.0
    %963 = vmatpush2.msra.mxu0 0.0
    %964 = vmatprep.subr.mxu0 0.0
    %965 = vmatpush2.msra.mxu0 0.0
    %966 = vmatprep.subr.mxu0 0.0
    %967 = vmatpush2.msra.mxu0 0.0
    %968 = vmatprep.subr.mxu0 0.0
    %969 = vmatpush2.msra.mxu0 0.0
    %970 = vmatprep.subr.mxu0 0.0
    %971 = vmatpush2.msra.mxu0 0.0
    %972 = vmatprep.subr.mxu0 0.0
    %973 = vmatpush2.msra.mxu0 0.0
    %974 = vmatprep.mubr.f32.mxu0 0.0
    %975 = vmatmul.mubr.f32.gmra.mxu0 %v908
    %v976 = vpop.f32.mrf.mxu0
    %v977 = vadd.f32 %v905, %v976
    %v978 = vpop.f32.mrf.mxu0
    %979 = vdwg.mxu0
    %v980 = vld [vmem:[%s5] sm:$0xff]
    %v981 = vld [vmem:[%s5 + $0x8] sm:$0xff]
    %v982 = vld [vmem:[%s5 + $0x10] sm:$0xff]
    %v983 = vld [vmem:[%s5 + $0x18] sm:$0xff]
    %v984 = vld [vmem:[%s6] sm:$0x1]
    %v986 = vlaneseq
    %v987 = vshrl.u32 %v986, 7
    %v988 = vsub.s32 0, %v987
    %v989 = vrot.slane %v984, %v988
    %v992 = vsel %vm108, %v977, 0
    %994 = vmatprep.subr.mxu0 0.0
    %995 = vmatpush1.msra.mxu0 0.0
    %996 = vmatprep.subr.mxu0 0.0
    %997 = vmatpush1.msra.mxu0 0.0
    %998 = vmatprep.subr.mxu0 0.0
    %999 = vmatpush1.msra.mxu0 0.0
    %1000 = vmatprep.subr.mxu0 0.0
    %1001 = vmatpush1.msra.mxu0 0.0
    %1002 = vmatprep.subr.mxu0 0.0
    %1003 = vmatpush1.msra.mxu0 0.0
    %1004 = vmatprep.subr.mxu0 0.0
    %1005 = vmatpush1.msra.mxu0 0.0
    %1006 = vmatprep.subr.mxu0 0.0
    %1007 = vmatpush1.msra.mxu0 0.0
    %1008 = vmatprep.subr.mxu0 0.0
    %1009 = vmatpush1.msra.mxu0 0.0
    %1010 = vmatprep.subr.mxu0 0.0
    %1011 = vmatpush1.msra.mxu0 0.0
    %1012 = vmatprep.subr.mxu0 0.0
    %1013 = vmatpush1.msra.mxu0 0.0
    %1014 = vmatprep.subr.mxu0 0.0
    %1015 = vmatpush1.msra.mxu0 0.0
    %1016 = vmatprep.subr.mxu0 0.0
    %1017 = vmatpush1.msra.mxu0 0.0
    %1018 = vmatprep.subr.mxu0 0.0
    %1019 = vmatpush1.msra.mxu0 %v983
    %1020 = vmatprep.subr.mxu0 0.0
    %1021 = vmatpush1.msra.mxu0 %v982
    %1022 = vmatprep.subr.mxu0 0.0
    %1023 = vmatpush1.msra.mxu0 %v981
    %1024 = vmatprep.subr.mxu0 0.0
    %1025 = vmatpush1.msra.mxu0 %v980
    %1026 = vmatprep.subr.mxu0 0.0
    %1027 = vmatpush2.msra.mxu0 0.0
    %1028 = vmatprep.subr.mxu0 0.0
    %1029 = vmatpush2.msra.mxu0 0.0
    %1030 = vmatprep.subr.mxu0 0.0
    %1031 = vmatpush2.msra.mxu0 0.0
    %1032 = vmatprep.subr.mxu0 0.0
    %1033 = vmatpush2.msra.mxu0 0.0
    %1034 = vmatprep.subr.mxu0 0.0
    %1035 = vmatpush2.msra.mxu0 0.0
    %1036 = vmatprep.subr.mxu0 0.0
    %1037 = vmatpush2.msra.mxu0 0.0
    %1038 = vmatprep.subr.mxu0 0.0
    %1039 = vmatpush2.msra.mxu0 0.0
    %1040 = vmatprep.subr.mxu0 0.0
    %1041 = vmatpush2.msra.mxu0 0.0
    %1042 = vmatprep.subr.mxu0 0.0
    %1043 = vmatpush2.msra.mxu0 0.0
    %1044 = vmatprep.subr.mxu0 0.0
    %1045 = vmatpush2.msra.mxu0 0.0
    %1046 = vmatprep.subr.mxu0 0.0
    %1047 = vmatpush2.msra.mxu0 0.0
    %1048 = vmatprep.subr.mxu0 0.0
    %1049 = vmatpush2.msra.mxu0 0.0
    %1050 = vmatprep.subr.mxu0 0.0
    %1051 = vmatpush2.msra.mxu0 0.0
    %1052 = vmatprep.subr.mxu0 0.0
    %1053 = vmatpush2.msra.mxu0 0.0
    %1054 = vmatprep.subr.mxu0 0.0
    %1055 = vmatpush2.msra.mxu0 0.0
    %1056 = vmatprep.subr.mxu0 0.0
    %1057 = vmatpush2.msra.mxu0 0.0
    %1058 = vmatprep.mubr.f32.mxu0 0.0
    %1059 = vmatmul.mubr.f32.gmra.mxu0 %v992
    %v1060 = vpop.f32.mrf.mxu0
    %v1061 = vadd.f32 %v989, %v1060
    %v1062 = vpop.f32.mrf.mxu0
    %1063 = vdwg.mxu0
    %v1064 = vxor.u32 %v1061, 2147483648
    %v1065 = vmul.f32 %v1064, 1.442695
    %v1066 = vpow.pop %v1065
    %v1067 = vadd.f32 %v1066, 1.0
    %v1068 = vrcp.pop %v1067
    %v1069 = vmul.f32 1.0, %v1068
    %v1070 = vtanh.pop %v1061
    %1072 = vrot.lane.b32.xlu0 %v1070, 64
    %v1073 = vpop.permute.xlu0 %1072
    %v1075 = vmul.f32 %v1069, %v1073
    %v1076 = vtanh.pop %v1075
    %1078 = vrot.lane.b32.xlu0 %v1076, 96
    %v1079 = vpop.permute.xlu0 %1078
    %v1081 = vmul.f32 %v1069, %v1079
    %v1082 = vld [vmem:[%s7] sm:$0xff]
    %v1083 = vld [vmem:[%s7 + $0x8] sm:$0xff]
    %v1084 = vld [vmem:[%s7 + $0x10] sm:$0xff]
    %v1085 = vld [vmem:[%s7 + $0x18] sm:$0xff]
    %v1086 = vld [vmem:[%s8] sm:$0x1]
    %v1088 = vlaneseq
    %v1089 = vshrl.u32 %v1088, 7
    %v1090 = vsub.s32 0, %v1089
    %v1091 = vrot.slane %v1086, %v1090
    %1094 = vrot.lane.b32.xlu0 %v1081, 32
    %v1095 = vpop.permute.xlu0 %1094
    %v1096 = vsel %vm108, %v1095, 0
    %1098 = vmatprep.subr.mxu0 0.0
    %1099 = vmatpush1.msra.mxu0 0.0
    %1100 = vmatprep.subr.mxu0 0.0
    %1101 = vmatpush1.msra.mxu0 0.0
    %1102 = vmatprep.subr.mxu0 0.0
    %1103 = vmatpush1.msra.mxu0 0.0
    %1104 = vmatprep.subr.mxu0 0.0
    %1105 = vmatpush1.msra.mxu0 0.0
    %1106 = vmatprep.subr.mxu0 0.0
    %1107 = vmatpush1.msra.mxu0 0.0
    %1108 = vmatprep.subr.mxu0 0.0
    %1109 = vmatpush1.msra.mxu0 0.0
    %1110 = vmatprep.subr.mxu0 0.0
    %1111 = vmatpush1.msra.mxu0 0.0
    %1112 = vmatprep.subr.mxu0 0.0
    %1113 = vmatpush1.msra.mxu0 0.0
    %1114 = vmatprep.subr.mxu0 0.0
    %1115 = vmatpush1.msra.mxu0 0.0
    %1116 = vmatprep.subr.mxu0 0.0
    %1117 = vmatpush1.msra.mxu0 0.0
    %1118 = vmatprep.subr.mxu0 0.0
    %1119 = vmatpush1.msra.mxu0 0.0
    %1120 = vmatprep.subr.mxu0 0.0
    %1121 = vmatpush1.msra.mxu0 0.0
    %1122 = vmatprep.subr.mxu0 0.0
    %1123 = vmatpush1.msra.mxu0 %v1085
    %1124 = vmatprep.subr.mxu0 0.0
    %1125 = vmatpush1.msra.mxu0 %v1084
    %1126 = vmatprep.subr.mxu0 0.0
    %1127 = vmatpush1.msra.mxu0 %v1083
    %1128 = vmatprep.subr.mxu0 0.0
    %1129 = vmatpush1.msra.mxu0 %v1082
    %1130 = vmatprep.subr.mxu0 0.0
    %1131 = vmatpush2.msra.mxu0 0.0
    %1132 = vmatprep.subr.mxu0 0.0
    %1133 = vmatpush2.msra.mxu0 0.0
    %1134 = vmatprep.subr.mxu0 0.0
    %1135 = vmatpush2.msra.mxu0 0.0
    %1136 = vmatprep.subr.mxu0 0.0
    %1137 = vmatpush2.msra.mxu0 0.0
    %1138 = vmatprep.subr.mxu0 0.0
    %1139 = vmatpush2.msra.mxu0 0.0
    %1140 = vmatprep.subr.mxu0 0.0
    %1141 = vmatpush2.msra.mxu0 0.0
    %1142 = vmatprep.subr.mxu0 0.0
    %1143 = vmatpush2.msra.mxu0 0.0
    %1144 = vmatprep.subr.mxu0 0.0
    %1145 = vmatpush2.msra.mxu0 0.0
    %1146 = vmatprep.subr.mxu0 0.0
    %1147 = vmatpush2.msra.mxu0 0.0
    %1148 = vmatprep.subr.mxu0 0.0
    %1149 = vmatpush2.msra.mxu0 0.0
    %1150 = vmatprep.subr.mxu0 0.0
    %1151 = vmatpush2.msra.mxu0 0.0
    %1152 = vmatprep.subr.mxu0 0.0
    %1153 = vmatpush2.msra.mxu0 0.0
    %1154 = vmatprep.subr.mxu0 0.0
    %1155 = vmatpush2.msra.mxu0 0.0
    %1156 = vmatprep.subr.mxu0 0.0
    %1157 = vmatpush2.msra.mxu0 0.0
    %1158 = vmatprep.subr.mxu0 0.0
    %1159 = vmatpush2.msra.mxu0 0.0
    %1160 = vmatprep.subr.mxu0 0.0
    %1161 = vmatpush2.msra.mxu0 0.0
    %1162 = vmatprep.mubr.f32.mxu0 0.0
    %1163 = vmatmul.mubr.f32.gmra.mxu0 %v1096
    %v1164 = vpop.f32.mrf.mxu0
    %v1165 = vadd.f32 %v1091, %v1164
    %v1166 = vpop.f32.mrf.mxu0
    %1167 = vdwg.mxu0
    %vm1168 = vcmask 123904
    %1169 = vst.msk [vmem:[#allocation2] sm:$0x3] %vm1168, %v1165
    // Predicated region
    $region38: #{cnnrnn_forward.1} parent=1 // pred_check
      _
    $region39: #{cnnrnn_forward.1} parent=1 // pred_check_branch
      %1171 = sbr.rel (0) target = $region41
    $region40: #{cnnrnn_forward.1} parent=1 // pred_region
      %s1173 = ssub.s32 32, 32
      %1174 = vsyncadd [#allocation3], %s1173
      %s1176 = sshll.u32 [#allocation2], 4
      %s1177 = int_to_ptr.vmem [resolvable:$true] %s1176
      %1179 = dma.vmem_to_hbm [thread:$0]  %s1177, 32, %s9, [#allocation3]
    $region41: #{cnnrnn_forward.1} parent=1 // pred_fallthru
      _
    // Predicated region
    $region42: #{cnnrnn_forward.1} parent=1 // pred_check
      _
    $region43: #{cnnrnn_forward.1} parent=1 // pred_check_branch
      %1181 = sbr.rel (0) target = $region45
    $region44: #{cnnrnn_forward.1} parent=1 // pred_region
      %1182 = dma.done [#allocation3], 32
    $region45: #{cnnrnn_forward.1} parent=1 // pred_fallthru
      _
    %1183 = vsyncpa [#allocation3], 1

</llo_original>
